<compile_context>
chip_gen: v5e
topology: v5e:2x2
jax: 0.10.0
libtpu: 0.0.40
codegen_flags: <defaults>
</compile_context>

<pallas_src>
import jax
import jax.numpy as jnp
from jax.experimental import pallas as pl
from jax.experimental.pallas import tpu as pltpu

_LANE = 128


def _chip_profile():
    """Per-generation tuning: per-operand block byte budget, scoped-VMEM limit,
    TensorCore count, and the small-tensor XLA-fallback threshold."""
    try:
        kind = jax.devices()[0].device_kind.lower()
    except Exception:
        kind = ""
    if "v7" in kind:
        # ~3.2 TB/s HBM, 64 MiB VMEM/TC, 2 TCs/chip.  8 MiB/operand blocks
        # (3 operands x 2 buffers x 8 MiB = 48 MiB) need the scoped limit raised.
        return {"block_bytes": 8 << 20, "vmem_limit": 50 << 20,
                "num_cores": 2, "small_fallback": 2 << 20}
    if "v6" in kind:
        # ~1.4 TB/s HBM, 128 MiB VMEM.  4 MiB/operand (24 MiB resident) fits
        # the 32 MiB default scoped limit without raising it.
        return {"block_bytes": 4 << 20, "vmem_limit": None,
                "num_cores": 1, "small_fallback": 1 << 20}
    if "v5" in kind and ("lite" in kind or "v5e" in kind):
        # ~820 GB/s HBM, 16 MiB default scoped VMEM.  2 MiB/operand (12 MiB
        # resident) fits; bigger blocks buy almost nothing at this bandwidth.
        return {"block_bytes": 2 << 20, "vmem_limit": None,
                "num_cores": 1, "small_fallback": 1 << 20}
    # Unknown / other parts (v4, v5p, interpret): conservative defaults.
    return {"block_bytes": 2 << 20, "vmem_limit": None,
            "num_cores": 1, "small_fallback": 1 << 20}


def _sum_kernel(x_ref, id_ref, o_ref):
    # Elementwise residual add on the current VMEM tile (VPU work; the kernel
    # as a whole is HBM-bandwidth bound, so DMA block size is the only lever).
    o_ref[...] = x_ref[...] + id_ref[...]


def pallas_sum(x: jax.Array, identity: jax.Array, *,
               donate_x: bool = False, block_bytes: int | None = None) -> jax.Array:
    """Elementwise add of two same-shape tensors via a Pallas TPU kernel."""
    assert x.shape == identity.shape, "x and identity must have the same shape"
    assert x.dtype == identity.dtype, "x and identity must have the same dtype"

    orig_shape = x.shape
    total = x.size
    if total == 0:
        return x + identity

    prof = _chip_profile()
    if block_bytes is None:
        block_bytes = prof["block_bytes"]

    itemsize = jnp.dtype(x.dtype).itemsize
    # Sublane pack factor: f32 -> 8 rows/vreg, bf16 -> 16, int8/fp8 -> 32.
    sublane = 8 * max(1, 4 // itemsize)

    # Totals that are not a multiple of the 128-lane width would need a
    # pad / slice / concat, each of which re-streams full arrays through HBM.
    # For a purely bandwidth-bound add, a fused XLA add is strictly faster
    # than adding copies, so fall back instead of faking it.
    if total % _LANE != 0:
        return x + identity

    rows = total // _LANE
    x2 = x.reshape(rows, _LANE)          # free view of the contiguous buffer
    id2 = identity.reshape(rows, _LANE)

    # Row tile derived purely from the per-operand byte budget, rounded to the
    # sublane pack factor so every vreg stays full (lane dim is already 128).
    rt_cap = max(sublane, (block_bytes // (_LANE * itemsize)) // sublane * sublane)
    if rows <= rt_cap:
        # Whole array in a single block (full-dim block, no masking needed).
        row_tile = rows
        # Split into exactly two equal sublane-aligned halves only when there
        # is a second TensorCore to feed; on 1-TC chips the grid is a serial
        # loop and splitting a mem-bound op is pure per-step overhead.
        if prof["num_cores"] > 1 and rows >= 2 * sublane and rows % (2 * sublane) == 0:
            row_tile = rows // 2
    else:
        row_tile = rt_cap

    grid = (pl.cdiv(rows, row_tile),)    # ragged last block is masked by Pallas

    call = pl.pallas_call(
        _sum_kernel,
        out_shape=jax.ShapeDtypeStruct((rows, _LANE), x.dtype),
        grid_spec=pltpu.PrefetchScalarGridSpec(
            num_scalar_prefetch=0,
            grid=grid,
            in_specs=[
                pl.BlockSpec((row_tile, _LANE), lambda i: (i, 0)),
                pl.BlockSpec((row_tile, _LANE), lambda i: (i, 0)),
            ],
            out_specs=pl.BlockSpec((row_tile, _LANE), lambda i: (i, 0)),
        ),
        compiler_params=pltpu.CompilerParams(
            dimension_semantics=("parallel",),
            vmem_limit_bytes=prof["vmem_limit"],
        ),
        cost_estimate=pl.CostEstimate(
            flops=total,
            transcendentals=0,
            bytes_accessed=3 * total * itemsize,
        ),
        # No-pad path only: the alias targets the caller's real buffer
        # (reshape is a view), so donation genuinely reduces peak HBM.
        input_output_aliases={0: 0} if donate_x else {},
    )
    out2 = call(x2, id2)
    return out2.reshape(orig_shape)


def residual_add(x: jax.Array, identity: jax.Array) -> jax.Array:
    """Dispatching wrapper: small residual adds stay on the fused XLA path
    (a pallas_call is a fusion barrier with fixed launch cost)."""
    if x.size < _chip_profile()["small_fallback"]:
        return x + identity
    return pallas_sum(x, identity)


if __name__ == "__main__":
    key = jax.random.PRNGKey(0)
    k1, k2, k3, k4, k5, k6, k7, k8 = jax.random.split(key, 8)

    # Small NCHW shape consistent with a ResNet residual add.
    B, C, H, W = 2, 4, 16, 16
    x = jax.random.normal(k1, (B, C, H, W), dtype=jnp.float32)
    identity = jax.random.normal(k2, (B, C, H, W), dtype=jnp.float32)

    out = jax.block_until_ready(pallas_sum(x, identity))
    ref = x + identity
    assert out.shape == ref.shape and out.dtype == ref.dtype
    assert jnp.allclose(out, ref, atol=1e-6, rtol=1e-6)

    # bf16 exercises the 16-row sublane pack factor on the Pallas path.
    xb = jax.random.normal(k3, (B, C, H, W), dtype=jnp.bfloat16)
    ib = jax.random.normal(k4, (B, C, H, W), dtype=jnp.bfloat16)
    outb = jax.block_until_ready(pallas_sum(xb, ib))
    assert jnp.allclose(outb.astype(jnp.float32), (xb + ib).astype(jnp.float32))

    # Multi-step grid with a ragged (masked) last row block: tiny per-operand
    # block budget override so the pl.cdiv path is exercised at small shape.
    xm = jax.random.normal(k5, (2, 4, 18, 64), dtype=jnp.float32)   # 72 rows of 128
    im = jax.random.normal(k6, (2, 4, 18, 64), dtype=jnp.float32)
    outm = jax.block_until_ready(pallas_sum(xm, im, block_bytes=8192))  # 16-row blocks
    assert jnp.allclose(outm, xm + im, atol=1e-6, rtol=1e-6)

    # Ragged total (not a multiple of 128 lanes) -> fused XLA-add fallback.
    xr = jax.random.normal(k7, (2, 3, 7, 9), dtype=jnp.bfloat16)
    ir = jax.random.normal(k8, (2, 3, 7, 9), dtype=jnp.bfloat16)
    outr = jax.block_until_ready(pallas_sum(xr, ir))
    assert jnp.allclose(outr.astype(jnp.float32), (xr + ir).astype(jnp.float32))

    # Dispatching wrapper (small tensor -> fused XLA add fast path).
    outd = jax.block_until_ready(residual_add(x, identity))
    assert jnp.allclose(outd, ref, atol=1e-6, rtol=1e-6)

    print("KERNEL_OK")
</pallas_src>

<mosaic_0001>
module attributes {stable_mosaic.version = 11 : i64} {
  func.func @_sum_kernel(%arg0: i32, %arg1: memref<16x128xf32, #tpu.memory_space<vmem>>, %arg2: memref<16x128xf32, #tpu.memory_space<vmem>>, %arg3: memref<16x128xf32, #tpu.memory_space<vmem>>) attributes {dimension_semantics = [#tpu.dimension_semantics<parallel>], iteration_bounds = array<i64: 1>, scalar_prefetch = 0 : i64, scratch_operands = 0 : i64, tpu.core_type = #tpu.core_type<tc>, window_params = [{transform_indices = @transform_0, window_bounds = array<i64: 16, 128>}, {transform_indices = @transform_1, window_bounds = array<i64: 16, 128>}, {transform_indices = @transform_2, window_bounds = array<i64: 16, 128>}]} {
    %c0 = arith.constant 0 : index
    %c0_0 = arith.constant 0 : index
    %0 = vector.load %arg1[%c0, %c0_0] : memref<16x128xf32, #tpu.memory_space<vmem>>, vector<16x128xf32>
    %c0_1 = arith.constant 0 : index
    %c0_2 = arith.constant 0 : index
    %1 = vector.load %arg2[%c0_1, %c0_2] : memref<16x128xf32, #tpu.memory_space<vmem>>, vector<16x128xf32>
    %2 = arith.addf %0, %1 : vector<16x128xf32>
    %c0_3 = arith.constant 0 : index
    %c0_4 = arith.constant 0 : index
    %3 = vector.load %arg3[%c0_3, %c0_4] : memref<16x128xf32, #tpu.memory_space<vmem>>, vector<16x128xf32>
    tpu.vector_store %arg3[%c0_3, %c0_4], %2 {strides = array<i32>} : memref<16x128xf32, #tpu.memory_space<vmem>>, vector<16x128xf32>,
    return
  }
  func.func @transform_0(%arg0: i32) -> (i32, i32) {
    %c0_i32 = arith.constant 0 : i32
    %c0_i32_0 = arith.constant 0 : i32
    return %arg0, %c0_i32 : i32, i32
  }
  func.func @transform_1(%arg0: i32) -> (i32, i32) {
    %c0_i32 = arith.constant 0 : i32
    %c0_i32_0 = arith.constant 0 : i32
    return %arg0, %c0_i32 : i32, i32
  }
  func.func @transform_2(%arg0: i32) -> (i32, i32) {
    %c0_i32 = arith.constant 0 : i32
    %c0_i32_0 = arith.constant 0 : i32
    return %arg0, %c0_i32 : i32, i32
  }
}

</mosaic_0001>

<llo_original>
// kernel: tpu_custom_call.1
$region0: #{tpu_custom_call.1}
  #allocation0 [shape = 'u32[]', space=smem, size = 0x4, offset = 0x4, fixed_abs, tag = 'smem constant byte address 0x4 - core index']
  #allocation1 [shape = 'u32[72,128]{1,0:T(1,128)}', space=vmem, size = 0x9000, scoped, tag = 'internal scratch']
  %s0 = inlined_call_operand.hbm [shape: f32[16,128], index: 0, kind: input, shape index: {}]
  %s1 = inlined_call_operand.hbm [shape: f32[16,128], index: 1, kind: input, shape index: {}]
  %s2 = inlined_call_operand.hbm [shape: f32[16,128], index: 2, kind: output, shape index: {}]
  %s3 = sld [smem:[#allocation0]]
  $region26: #{tpu_custom_call.1} parent=0
    _
  %s5 = ssub.s32 1, %s3
  %s6 = scalar_select 0, %s5, %s3
  $region1: #{tpu_custom_call.1} parent=0
    #allocation2 [shape = 'u8[8192]{0}', space=vmem, size = 0x2000, scoped, tag = 'input window, operand 0, single buffered']
    #allocation3 [shape = 's32[1]{0}', space=sflag, size = 0x4, scoped, tag = 'scoped memory for tpu_custom_call.1']
    #allocation4 [shape = 's32[1]{0}', space=sflag, size = 0x4, scoped, tag = 'scoped memory for tpu_custom_call.1']
    #allocation5 [shape = 'u8[8192]{0}', space=vmem, size = 0x2000, scoped, tag = 'input window, operand 1, single buffered']
    #allocation6 [shape = 's32[1]{0}', space=sflag, size = 0x4, scoped, tag = 'scoped memory for tpu_custom_call.1']
    #allocation7 [shape = 'u8[8192]{0}', space=vmem, size = 0x2000, scoped, tag = 'output window, operand 0, single buffered']
    %7 = vsyncpa [#allocation3], 0
    %8 = vsyncpa [#allocation6], 0
    %9 = vsyncpa [#allocation4], 0
    // Predicated region
    $region2: #{tpu_custom_call.1} parent=1 // pred_check
      _
    $region3: #{tpu_custom_call.1} parent=1 // pred_check_branch
      %11 = sbr.rel (0) target = $region5
    $region4: #{tpu_custom_call.1} parent=1 // pred_region
      %13 = vsyncadd [#allocation3], 0
      %s14 = sshll.u32 %s0, 4
      %s15 = int_to_ptr.hbm [resolvable:$true] %s14
      %s16 = sshll.u32 [#allocation2], 4
      %s17 = int_to_ptr.vmem [resolvable:$true] %s16
      %22 = dma.hbm_to_vmem [thread:$0]  %s15, 256, %s17, [#allocation3], 128, 128, 8
    $region5: #{tpu_custom_call.1} parent=1 // pred_fallthru
      _
    // Predicated region
    $region6: #{tpu_custom_call.1} parent=1 // pred_check
      _
    $region7: #{tpu_custom_call.1} parent=1 // pred_check_branch
      %24 = sbr.rel (0) target = $region9
    $region8: #{tpu_custom_call.1} parent=1 // pred_region
      %26 = vsyncadd [#allocation6], 0
      %s27 = sshll.u32 %s1, 4
      %s28 = int_to_ptr.hbm [resolvable:$true] %s27
      %s29 = sshll.u32 [#allocation5], 4
      %s30 = int_to_ptr.vmem [resolvable:$true] %s29
      %35 = dma.hbm_to_vmem [thread:$0]  %s28, 256, %s30, [#allocation6], 128, 128, 8
    $region9: #{tpu_custom_call.1} parent=1 // pred_fallthru
      _
    // Predicated region
    $region10: #{tpu_custom_call.1} parent=1 // pred_check
      _
    $region11: #{tpu_custom_call.1} parent=1 // pred_check_branch
      %37 = sbr.rel (0) target = $region13
    $region12: #{tpu_custom_call.1} parent=1 // pred_region
      %39 = dma.done [#allocation3], 256
    $region13: #{tpu_custom_call.1} parent=1 // pred_fallthru
      _
    // Predicated region
    $region14: #{tpu_custom_call.1} parent=1 // pred_check
      _
    $region15: #{tpu_custom_call.1} parent=1 // pred_check_branch
      %41 = sbr.rel (0) target = $region17
    $region16: #{tpu_custom_call.1} parent=1 // pred_region
      %43 = dma.done [#allocation6], 256
    $region17: #{tpu_custom_call.1} parent=1 // pred_fallthru
      _
    %v44 = vld [vmem:[#allocation2] sm:$0xff]
    %v45 = vld [vmem:[#allocation2 + $0x8] sm:$0xff]
    %v46 = vld [vmem:[#allocation5] sm:$0xff]
    %v47 = vld [vmem:[#allocation5 + $0x8] sm:$0xff]
    %v48 = vadd.f32 %v44, %v46
    %v49 = vadd.f32 %v45, %v47
    %50 = vst [vmem:[#allocation7] sm:$0xff] %v48
    %51 = vst [vmem:[#allocation7 + $0x8] sm:$0xff] %v49
    // Predicated region
    $region18: #{tpu_custom_call.1} parent=1 // pred_check
      _
    $region19: #{tpu_custom_call.1} parent=1 // pred_check_branch
      %53 = sbr.rel (0) target = $region21
    $region20: #{tpu_custom_call.1} parent=1 // pred_region
      %55 = vsyncadd [#allocation4], 0
      %s56 = sshll.u32 [#allocation7], 4
      %s57 = int_to_ptr.vmem [resolvable:$true] %s56
      %s58 = sshll.u32 %s2, 4
      %s59 = int_to_ptr.hbm [resolvable:$true] %s58
      %64 = dma.vmem_to_hbm [thread:$0]  %s57, 256, %s59, [#allocation4], 128, 128, 8
    $region21: #{tpu_custom_call.1} parent=1 // pred_fallthru
      _
    // Predicated region
    $region22: #{tpu_custom_call.1} parent=1 // pred_check
      _
    $region23: #{tpu_custom_call.1} parent=1 // pred_check_branch
      %66 = sbr.rel (0) target = $region25
    $region24: #{tpu_custom_call.1} parent=1 // pred_region
      %68 = dma.done [#allocation4], 256
    $region25: #{tpu_custom_call.1} parent=1 // pred_fallthru
      _
    %69 = vsyncpa [#allocation3], 1
    %70 = vsyncpa [#allocation6], 1
    %71 = vsyncpa [#allocation4], 1

</llo_original>
